<compile_context>
chip_gen: v6e
topology: v6e:2x2x1
jax: 0.10.0
libtpu: 0.0.40
codegen_flags: <defaults>
</compile_context>

<pallas_src>
import jax
import jax.numpy as jnp
from jax.experimental import pallas as pl
from jax.experimental.pallas import tpu as pltpu


def _round_up(x: int, m: int) -> int:
    return (x + m - 1) // m * m


# ----------------------------------------------------------------------------
# Glue: bilinear upsample x2, align_corners=True (matches nn.Upsample exactly)
# ----------------------------------------------------------------------------
def _interp_matrix(n_in: int, n_out: int) -> jnp.ndarray:
    """Row-stochastic (n_out, n_in) matrix for 1-D linear interpolation with
    align_corners=True semantics (PyTorch)."""
    i = jnp.arange(n_out, dtype=jnp.float32)
    if n_out > 1 and n_in > 1:
        src = i * (n_in - 1) / (n_out - 1)
    else:
        src = jnp.zeros_like(i)
    lo = jnp.clip(jnp.floor(src).astype(jnp.int32), 0, n_in - 1)
    hi = jnp.clip(lo + 1, 0, n_in - 1)
    frac = src - lo.astype(jnp.float32)
    m = jnp.zeros((n_out, n_in), dtype=jnp.float32)
    rows = jnp.arange(n_out)
    m = m.at[rows, lo].add(1.0 - frac)
    m = m.at[rows, hi].add(frac)
    return m


def bilinear_upsample_x2_align_corners(x: jnp.ndarray) -> jnp.ndarray:
    """x: (B, C, H, W) -> (B, C, 2H, 2W), bilinear, align_corners=True.
    Separable: two small matmuls (rows, then cols)."""
    _, _, h, w = x.shape
    mh = _interp_matrix(h, 2 * h)              # (2h, h)
    mw = _interp_matrix(w, 2 * w)              # (2w, w)
    y = jnp.einsum("oh,bchw->bcow", mh, x)     # interpolate rows
    y = jnp.einsum("pw,bcow->bcop", mw, y)     # interpolate cols
    return y


# ----------------------------------------------------------------------------
# Pallas kernel: sigmoid( w_row @ x_fullres + upsampled_partial + bias )
# ----------------------------------------------------------------------------
def _make_prb_head_kernel(has_partial: bool):
    if has_partial:
        def kernel(x_ref, p_ref, w_ref, b_ref, o_ref):
            # x_ref: (1, C0, npix) full-res feature tile (channels on sublanes)
            # p_ref: (1, 1, npix)  upsampled single-channel half-res partial
            # w_ref: (1, C0)       fused weight row (VMEM)
            # b_ref: (1, 1)        fused bias scalar (SMEM)
            # o_ref: (1, 1, npix)  lane-dense output
            acc = jnp.dot(w_ref[...], x_ref[0],
                          preferred_element_type=jnp.float32)      # MXU
            acc = acc + p_ref[0] + b_ref[0, 0]                     # VPU
            o_ref[0] = jax.nn.sigmoid(acc).astype(o_ref.dtype)     # EUP
    else:
        def kernel(x_ref, w_ref, b_ref, o_ref):
            acc = jnp.dot(w_ref[...], x_ref[0],
                          preferred_element_type=jnp.float32)
            acc = acc + b_ref[0, 0]
            o_ref[0] = jax.nn.sigmoid(acc).astype(o_ref.dtype)
    return kernel


def _pick_npix(hw_pad: int, max_block: int, min_blocks: int) -> int:
    """Largest multiple of 128 that divides hw_pad, <= max_block, and leaves
    at least min_blocks pixel blocks when possible."""
    cap = min(max_block, hw_pad)
    if min_blocks > 1 and hw_pad >= 128 * min_blocks:
        cap = min(cap, hw_pad // min_blocks)
    cap = max((cap // 128) * 128, 128)
    for cand in range(cap, 127, -128):
        if hw_pad % cand == 0:
            return cand
    return 128


def prb_head(x0, p_full, w_row, b_comb, *, npix, vmem_limit_bytes):
    """x0: (B, C0, HW_pad) full-res feature; p_full: (B, 1, HW_pad) or None;
    w_row: (1, C0); b_comb: (1, 1). Returns (B, 1, HW_pad) sigmoid output."""
    b, c0, hw_pad = x0.shape
    assert hw_pad % npix == 0
    grid = (b, hw_pad // npix)
    has_partial = p_full is not None

    in_specs = [pl.BlockSpec((1, c0, npix), lambda bi, pi: (bi, 0, pi))]
    args = [x0]
    if has_partial:
        in_specs.append(pl.BlockSpec((1, 1, npix), lambda bi, pi: (bi, 0, pi)))
        args.append(p_full)
    in_specs.append(pl.BlockSpec((1, c0), lambda bi, pi: (0, 0)))       # weights
    args.append(w_row)
    in_specs.append(pl.BlockSpec(memory_space=pltpu.MemorySpace.SMEM))  # bias
    args.append(b_comb)

    out_spec = pl.BlockSpec((1, 1, npix), lambda bi, pi: (bi, 0, pi))

    return pl.pallas_call(
        _make_prb_head_kernel(has_partial),
        out_shape=jax.ShapeDtypeStruct((b, 1, hw_pad), jnp.float32),
        grid=grid,
        in_specs=in_specs,
        out_specs=out_spec,
        compiler_params=pltpu.CompilerParams(
            dimension_semantics=("parallel", "parallel"),
            vmem_limit_bytes=vmem_limit_bytes,
        ),
    )(*args)


# ----------------------------------------------------------------------------
# Full PRB forward
# ----------------------------------------------------------------------------
def prb_forward(decoder_features, w1, b1, w2, b2, *,
                max_pix_block=8192, vmem_budget_bytes=24 << 20):
    """decoder_features[0]: (B, C0, H, W); decoder_features[i>0]: (B, Ci, H/2, W/2).
    w1: (C_total, C_total), b1: (C_total,), w2: (1, C_total), b2: (1,).
    Returns (B, 1, H, W)."""
    feats = decoder_features
    b, c0, h, w = feats[0].shape
    hw = h * w
    c_total = sum(f.shape[1] for f in feats)

    # Algebraic fusion of the two 1x1 convs (no nonlinearity between them):
    #   y = w2 @ (w1 @ x + b1) + b2 = (w2 @ w1) @ x + (w2 @ b1 + b2)
    w_comb = (w2 @ w1).reshape(c_total)                  # (C_total,)
    b_comb = (w2 @ b1 + b2).reshape(1, 1).astype(jnp.float32)

    # Per-pyramid-level slices of the fused weight.
    splits, off = [], 0
    for f in feats:
        ci = f.shape[1]
        splits.append(w_comb[off:off + ci])
        off += ci

    # Commute fused-conv <-> upsample for half-res levels: reduce channels at
    # HALF resolution, sum across levels, upsample ONE channel to full res.
    p_half = None
    for f, w_i in zip(feats[1:], splits[1:]):
        contrib = jnp.einsum("c,bchw->bhw", w_i, f,
                             preferred_element_type=jnp.float32)
        p_half = contrib if p_half is None else p_half + contrib
    has_partial = p_half is not None

    p_full = None
    if has_partial:
        p_up = bilinear_upsample_x2_align_corners(p_half[:, None, :, :])
        p_full = p_up.reshape(b, 1, hw)
        # TODO(synk): fold the single-channel bilinear x2 into the kernel so
        # the half-res partial never round-trips HBM at full resolution.

    # Lane-dense pixel tiling; pad (by < 128 px) only if HW % 128 != 0.
    hw_pad = _round_up(hw, 128)

    # VMEM budget: double-buffered feature + partial + output blocks.
    c0_pad = _round_up(c0, 8)
    sublanes = c0_pad + (8 if has_partial else 0) + 8
    budget_pix = max(128, (vmem_budget_bytes // (2 * 4 * sublanes)) // 128 * 128)
    min_blocks = 1 if b >= 2 else 2   # keep >= 2 grid steps for v7x megacore
    npix = _pick_npix(hw_pad, min(max_pix_block, budget_pix), min_blocks)

    x0 = feats[0].reshape(b, c0, hw)
    if hw_pad != hw:
        # TODO(synk): guarded ragged last block instead of this (small) pad.
        x0 = jnp.pad(x0, ((0, 0), (0, 0), (0, hw_pad - hw)))
        if has_partial:
            p_full = jnp.pad(p_full, ((0, 0), (0, 0), (0, hw_pad - hw)))

    w_row = splits[0].reshape(1, c0).astype(jnp.float32)

    needed = 2 * 4 * sublanes * npix + (64 << 10)   # double-buffered blocks
    vmem_limit = int(min(max(needed + (4 << 20), 16 << 20), 32 << 20))

    out = prb_head(x0, p_full, w_row, b_comb,
                   npix=npix, vmem_limit_bytes=vmem_limit)
    return out[:, :, :hw].reshape(b, 1, h, w)


def prb_reference(decoder_features, w1, b1, w2, b2):
    """Pure-JAX reference (two-step, unfused, upsample-before-conv)."""
    ups = [decoder_features[0]]
    for f in decoder_features[1:]:
        ups.append(bilinear_upsample_x2_align_corners(f))
    fused = jnp.concatenate(ups, axis=1)
    h1 = jnp.einsum("oc,bchw->bohw", w1, fused) + b1[None, :, None, None]
    y = jnp.einsum("oc,bchw->bohw", w2, h1) + b2[None, :, None, None]
    return jax.nn.sigmoid(y)


if __name__ == "__main__":
    key = jax.random.PRNGKey(0)
    k_f0, k_f1, k_f2, k_w1, k_b1, k_w2, k_b2 = jax.random.split(key, 7)

    # Feature 0 at full res, features 1..N at half res (PRB's concat assumption).
    B, H, W = 2, 16, 16
    f0 = jax.random.normal(k_f0, (B, 4, H, W), dtype=jnp.float32)
    f1 = jax.random.normal(k_f1, (B, 4, H // 2, W // 2), dtype=jnp.float32)
    f2 = jax.random.normal(k_f2, (B, 4, H // 2, W // 2), dtype=jnp.float32)
    decoder_features = [f0, f1, f2]
    c_total = sum(f.shape[1] for f in decoder_features)   # 12

    # Deterministic synthetic parameters (Conv2d k=1 weights, flattened).
    w1 = 0.1 * jax.random.normal(k_w1, (c_total, c_total), dtype=jnp.float32)
    b1 = 0.1 * jax.random.normal(k_b1, (c_total,), dtype=jnp.float32)
    w2 = 0.1 * jax.random.normal(k_w2, (1, c_total), dtype=jnp.float32)
    b2 = 0.1 * jax.random.normal(k_b2, (1,), dtype=jnp.float32)

    out = jax.jit(prb_forward)(decoder_features, w1, b1, w2, b2)
    out = jax.block_until_ready(out)

    ref = prb_reference(decoder_features, w1, b1, w2, b2)
    assert out.shape == (B, 1, H, W), out.shape
    assert jnp.allclose(out, ref, atol=2e-5, rtol=2e-5), "mismatch vs reference"

    print("KERNEL_OK")
</pallas_src>

<mosaic_0001>
module attributes {stable_mosaic.version = 11 : i64} {
  func.func private @main(%arg0: i32) attributes {dimension_semantics = [#tpu.dimension_semantics<core_parallel>], iteration_bounds = array<i64: 2>, tpu.core_type = #tpu.core_type<sc_scalar_subcore>, window_params = []} {
    return
  }
}

module attributes {stable_mosaic.version = 11 : i64} {
  func.func private @main(%arg0: i32) attributes {dimension_semantics = [#tpu.dimension_semantics<core_parallel>], iteration_bounds = array<i64: 2>, tpu.core_type = #tpu.core_type<sc_scalar_subcore>, window_params = []} {
    return
  }
}

module attributes {stable_mosaic.version = 11 : i64} {
  func.func @kernel(%arg0: i32, %arg1: i32, %arg2: memref<1x4x256xf32, #tpu.memory_space<vmem>>, %arg3: memref<1x1x256xf32, #tpu.memory_space<vmem>>, %arg4: memref<1x4xf32, #tpu.memory_space<vmem>>, %arg5: memref<1x1xf32, #tpu.memory_space<smem>>, %arg6: memref<1x1x256xf32, #tpu.memory_space<vmem>>) attributes {dimension_semantics = [#tpu.dimension_semantics<parallel>, #tpu.dimension_semantics<parallel>], iteration_bounds = array<i64: 2, 1>, scalar_prefetch = 0 : i64, scratch_operands = 0 : i64, tpu.core_type = #tpu.core_type<tc>, window_params = [{transform_indices = @transform_0, window_bounds = array<i64: 1, 4, 256>}, {transform_indices = @transform_1, window_bounds = array<i64: 1, 1, 256>}, {pipeline_mode = #tpu.pipeline_mode<synchronous>, transform_indices = @transform_2, window_bounds = array<i64: 1, 4>}, {transform_indices = @transform_3, window_bounds = array<i64: 1, 1>}, {transform_indices = @transform_4, window_bounds = array<i64: 1, 1, 256>}]} {
    %c0 = arith.constant 0 : index
    %c0_0 = arith.constant 0 : index
    %0 = vector.load %arg4[%c0, %c0_0] : memref<1x4xf32, #tpu.memory_space<vmem>>, vector<1x4xf32>
    %c0_1 = arith.constant 0 : index
    %c0_2 = arith.constant 0 : index
    %c0_3 = arith.constant 0 : index
    %1 = vector.load %arg2[%c0_1, %c0_2, %c0_3] : memref<1x4x256xf32, #tpu.memory_space<vmem>>, vector<1x4x256xf32>
    %2 = vector.shape_cast %1 : vector<1x4x256xf32> to vector<4x256xf32>
    %cst = arith.constant dense<0.000000e+00> : vector<1x256xf32>
    %3 = tpu.matmul %0, %2, %cst {dimension_numbers = #tpu.dot_dimension_numbers<[1], [0], [0], [1], [0, 0, 1, 1], [], []>} : vector<1x4xf32>, vector<4x256xf32>, vector<1x256xf32> -> vector<1x256xf32>
    %c0_4 = arith.constant 0 : index
    %c0_5 = arith.constant 0 : index
    %c0_6 = arith.constant 0 : index
    %4 = vector.load %arg3[%c0_4, %c0_5, %c0_6] : memref<1x1x256xf32, #tpu.memory_space<vmem>>, vector<1x1x256xf32>
    %5 = vector.shape_cast %4 : vector<1x1x256xf32> to vector<1x256xf32>
    %6 = arith.addf %3, %5 : vector<1x256xf32>
    %c0_7 = arith.constant 0 : index
    %c0_8 = arith.constant 0 : index
    %7 = memref.load %arg5[%c0_7, %c0_8] : memref<1x1xf32, #tpu.memory_space<smem>>
    %8 = vector.broadcast %7 : f32 to vector<1x256xf32>
    %9 = arith.addf %6, %8 : vector<1x256xf32>
    %10 = arith.negf %9 : vector<1x256xf32>
    %11 = math.exp %10 : vector<1x256xf32>
    %cst_9 = arith.constant 1.000000e+00 : f32
    %12 = vector.broadcast %cst_9 : f32 to vector<1x256xf32>
    %13 = arith.addf %12, %11 : vector<1x256xf32>
    %14 = arith.divf %12, %13 : vector<1x256xf32>
    %c0_10 = arith.constant 0 : index
    %c0_11 = arith.constant 0 : index
    %c0_12 = arith.constant 0 : index
    %15 = vector.load %arg6[%c0_10, %c0_11, %c0_12] : memref<1x1x256xf32, #tpu.memory_space<vmem>>, vector<1x1x256xf32>
    %16 = vector.shape_cast %15 : vector<1x1x256xf32> to vector<1x256xf32>
    %17 = vector.shape_cast %14 : vector<1x256xf32> to vector<1x1x256xf32>
    tpu.vector_store %arg6[%c0_10, %c0_11, %c0_12], %17 {strides = array<i32>} : memref<1x1x256xf32, #tpu.memory_space<vmem>>, vector<1x1x256xf32>,
    return
  }
  func.func @transform_0(%arg0: i32, %arg1: i32) -> (i32, i32, i32) {
    %c0_i32 = arith.constant 0 : i32
    %c0_i32_0 = arith.constant 0 : i32
    return %arg0, %c0_i32, %arg1 : i32, i32, i32
  }
  func.func @transform_1(%arg0: i32, %arg1: i32) -> (i32, i32, i32) {
    %c0_i32 = arith.constant 0 : i32
    %c0_i32_0 = arith.constant 0 : i32
    return %arg0, %c0_i32, %arg1 : i32, i32, i32
  }
  func.func @transform_2(%arg0: i32, %arg1: i32) -> (i32, i32) {
    %c0_i32 = arith.constant 0 : i32
    %c0_i32_0 = arith.constant 0 : i32
    %c0_i32_1 = arith.constant 0 : i32
    return %c0_i32, %c0_i32_0 : i32, i32
  }
  func.func @transform_3(%arg0: i32, %arg1: i32) -> (i32, i32) {
    %c0_i32 = arith.constant 0 : i32
    %c0_i32_0 = arith.constant 0 : i32
    %c0_i32_1 = arith.constant 0 : i32
    return %c0_i32, %c0_i32_0 : i32, i32
  }
  func.func @transform_4(%arg0: i32, %arg1: i32) -> (i32, i32, i32) {
    %c0_i32 = arith.constant 0 : i32
    %c0_i32_0 = arith.constant 0 : i32
    return %arg0, %c0_i32, %arg1 : i32, i32, i32
  }
}

</mosaic_0001>

<llo_original>
// kernel: prb_forward.1
$region0: #{prb_forward.1}
  #allocation0 [shape = 'u32[]', space=smem, size = 0x4, offset = 0x4, fixed_abs, tag = 'smem constant byte address 0x4 - core index']
  #allocation1 [shape = 'u32[144,128]{1,0:T(1,128)}', space=vmem, size = 0x12000, scoped, tag = 'internal scratch']
  #allocation2 [shape = 'f32[1,1]{1,0:T(1,128)S(6)}', space=smem, size = 0x200, scoped, tag = 'scoped memory for prb_forward.1']
  %s0 = inlined_call_operand.vmem [shape: f32[2,4,256], index: 0, kind: input, shape index: {}]
  %s1 = inlined_call_operand.vmem [shape: f32[2,1,256], index: 1, kind: input, shape index: {}]
  %s2 = inlined_call_operand.vmem [shape: f32[1,4], index: 2, kind: input, shape index: {}]
  %s3 = inlined_call_operand.<no memory space> [shape: f32[1,1], index: 3, kind: input, shape index: {}]
  %s4 = inlined_call_operand.vmem [shape: f32[2,1,256], index: 4, kind: output, shape index: {}]
  %s5 = sld [smem:[#allocation0]]
  $region49: #{prb_forward.1} parent=0
    _
  %s7 = ssub.s32 1, %s5
  %s8 = scalar_select 0, %s7, %s5
  %9 = sst [smem:[#allocation2]] %s3
  loop: start=0, step=1, limit=4
  $region2: #{prb_forward.1} parent=0 // loop_pre_header
    _
  $region3: #{prb_forward.1} parent=0 // loop_header
    %s11 = sphi 0, %s15
    %p12 = scmp.ge.s32.totalorder %s11, 4
    %s18 = sphi 0, %s30
    %s19 = sphi 0, %s26
    %s20 = sphi 0, %s18
    %s21 = sphi 0, %s19
    %s22 = sphi 0, %s20
    %s23 = sphi 0, %s21
    %s35 = sphi 0, %s37
    %s38 = sphi 0, %s35
    %s39 = sphi 0, %s38
    %s55 = sphi 0, %s39
    %s63 = sphi 0, %s65
    %s66 = sphi 0, %s63
    %s67 = sphi 0, %s66
    %s83 = sphi 0, %s67
    %s87 = sphi 0, %s87
    %s89 = sphi 0, %s87
    %s90 = sphi 0, %s89
    %s104 = sphi 0, %s90
    %s108 = sphi 0, %s108
    %s110 = sphi 0, %s108
    %s111 = sphi 0, %s110
    %s125 = sphi 0, %s111
    %s133 = sphi 0, %s135
    %s136 = sphi 0, %s133
    %s137 = sphi 0, %s136
    %s153 = sphi 0, %s137
  $region4: #{prb_forward.1} parent=0 // loop_header_branch
    %14 = sbr.rel (%p12) target = $region8
  $region5: #{prb_forward.1} parent=0 // loop_body
    %s16 = ssub.s32 %s11, 1
    %s17 = ssub.s32 %s11, 2
    %s24 = sadd.s32 1, %s19
    %p25 = scmp.ge.s32.totalorder %s24, 1
    %s26 = scalar_select %p25, 0, %s24
    %s27 = sadd.s32 1, %s18
    %s28 = scalar_select %p25, %s27, %s18
    %p29 = scmp.ge.s32.totalorder %s28, 2
    %s30 = scalar_select %p29, 0, %s28
    %s31 = ssub.s32 %s18, %s30
    %s32 = ssub.s32 %s19, %s26
    %s33 = sor.u32 %s31, %s32
    %p34 = scmp.eq.s32.totalorder %s33, 0
    %s36 = sadd.s32 %s35, 1
    %s37 = scalar_select %p34, %s35, %s36
    %p40 = pneg %p34
    %p41 = scmp.eq.s32.totalorder %s11, 1
    %p42 = por %p40, %p41
    %p43 = scmp.ne.s32.totalorder %s35, %s38
    %p44 = scmp.eq.s32.totalorder %s11, 0
    %p45 = por %p43, %p44
    %p46 = scmp.ne.s32.totalorder %s35, %s38
    %p47 = scmp.eq.s32.totalorder %s16, 1
    %p48 = por %p46, %p47
    %p49 = scmp.ne.s32.totalorder %s38, %s39
    %p50 = scmp.eq.s32.totalorder %s16, 0
    %p51 = por %p49, %p50
    %p52 = scmp.ne.s32.totalorder %s38, %s39
    %p53 = scmp.eq.s32.totalorder %s17, 1
    %p54 = por %p52, %p53
    %p56 = scmp.ne.s32.totalorder %s39, %s55
    %p57 = scmp.eq.s32.totalorder %s17, 0
    %p58 = por %p56, %p57
    %s59 = ssub.s32 %s18, %s30
    %s60 = ssub.s32 %s19, %s26
    %s61 = sor.u32 %s59, %s60
    %p62 = scmp.eq.s32.totalorder %s61, 0
    %s64 = sadd.s32 %s63, 1
    %s65 = scalar_select %p62, %s63, %s64
    %p68 = pneg %p62
    %p69 = scmp.eq.s32.totalorder %s11, 1
    %p70 = por %p68, %p69
    %p71 = scmp.ne.s32.totalorder %s63, %s66
    %p72 = scmp.eq.s32.totalorder %s11, 0
    %p73 = por %p71, %p72
    %p74 = scmp.ne.s32.totalorder %s63, %s66
    %p75 = scmp.eq.s32.totalorder %s16, 1
    %p76 = por %p74, %p75
    %p77 = scmp.ne.s32.totalorder %s66, %s67
    %p78 = scmp.eq.s32.totalorder %s16, 0
    %p79 = por %p77, %p78
    %p80 = scmp.ne.s32.totalorder %s66, %s67
    %p81 = scmp.eq.s32.totalorder %s17, 1
    %p82 = por %p80, %p81
    %p84 = scmp.ne.s32.totalorder %s67, %s83
    %p85 = scmp.eq.s32.totalorder %s17, 0
    %p86 = por %p84, %p85
    %s88 = sadd.s32 %s87, 1
    %p91 = scmp.eq.s32.totalorder %s11, 1
    %p92 = scmp.ne.s32.totalorder %s87, %s89
    %p93 = scmp.eq.s32.totalorder %s11, 0
    %p94 = por %p92, %p93
    %p95 = scmp.ne.s32.totalorder %s87, %s89
    %p96 = scmp.eq.s32.totalorder %s16, 1
    %p97 = por %p95, %p96
    %p98 = scmp.ne.s32.totalorder %s89, %s90
    %p99 = scmp.eq.s32.totalorder %s16, 0
    %p100 = por %p98, %p99
    %p101 = scmp.ne.s32.totalorder %s89, %s90
    %p102 = scmp.eq.s32.totalorder %s17, 1
    %p103 = por %p101, %p102
    %p105 = scmp.ne.s32.totalorder %s90, %s104
    %p106 = scmp.eq.s32.totalorder %s17, 0
    %p107 = por %p105, %p106
    %s109 = sadd.s32 %s108, 1
    %p112 = scmp.eq.s32.totalorder %s11, 1
    %p113 = scmp.ne.s32.totalorder %s108, %s110
    %p114 = scmp.eq.s32.totalorder %s11, 0
    %p115 = por %p113, %p114
    %p116 = scmp.ne.s32.totalorder %s108, %s110
    %p117 = scmp.eq.s32.totalorder %s16, 1
    %p118 = por %p116, %p117
    %p119 = scmp.ne.s32.totalorder %s110, %s111
    %p120 = scmp.eq.s32.totalorder %s16, 0
    %p121 = por %p119, %p120
    %p122 = scmp.ne.s32.totalorder %s110, %s111
    %p123 = scmp.eq.s32.totalorder %s17, 1
    %p124 = por %p122, %p123
    %p126 = scmp.ne.s32.totalorder %s111, %s125
    %p127 = scmp.eq.s32.totalorder %s17, 0
    %p128 = por %p126, %p127
    %s129 = ssub.s32 %s18, %s30
    %s130 = ssub.s32 %s19, %s26
    %s131 = sor.u32 %s129, %s130
    %p132 = scmp.eq.s32.totalorder %s131, 0
    %s134 = sadd.s32 %s133, 1
    %s135 = scalar_select %p132, %s133, %s134
    %p138 = pneg %p132
    %p139 = scmp.eq.s32.totalorder %s11, 1
    %p140 = por %p138, %p139
    %p141 = scmp.ne.s32.totalorder %s133, %s136
    %p142 = scmp.eq.s32.totalorder %s11, 0
    %p143 = por %p141, %p142
    %p144 = scmp.ne.s32.totalorder %s133, %s136
    %p145 = scmp.eq.s32.totalorder %s16, 1
    %p146 = por %p144, %p145
    %p147 = scmp.ne.s32.totalorder %s136, %s137
    %p148 = scmp.eq.s32.totalorder %s16, 0
    %p149 = por %p147, %p148
    %p150 = scmp.ne.s32.totalorder %s136, %s137
    %p151 = scmp.eq.s32.totalorder %s17, 1
    %p152 = por %p150, %p151
    %p154 = scmp.ne.s32.totalorder %s137, %s153
    %p155 = scmp.eq.s32.totalorder %s17, 0
    %p156 = por %p154, %p155
    %p157 = scmp.le.s32.totalorder 1, %s11
    %p158 = scmp.lt.s32.totalorder %s11, 3
    %p159 = pnand %p157, %p158
    %p160 = pneg %p159
    // Predicated region
    $region9: #{prb_forward.1} parent=5 // pred_check
      _
    $region10: #{prb_forward.1} parent=5 // pred_check_branch
      %162 = sbr.rel (%p159) target = $region12
    $region11: #{prb_forward.1} parent=5 // pred_region
      %s163 = ssub.s32 %s11, 1
      // Predicated region
      $region13: #{prb_forward.1} parent=11 // pred_check
        %p164 = pneg %p100
      $region14: #{prb_forward.1} parent=11 // pred_check_branch
        %166 = sbr.rel (%p164) target = $region16
      $region15: #{prb_forward.1} parent=11 // pred_region
        _
      $region16: #{prb_forward.1} parent=11 // pred_fallthru
        _
      // Predicated region
      $region17: #{prb_forward.1} parent=11 // pred_check
        %p167 = pneg %p121
      $region18: #{prb_forward.1} parent=11 // pred_check_branch
        %169 = sbr.rel (%p167) target = $region20
      $region19: #{prb_forward.1} parent=11 // pred_region
        _
      $region20: #{prb_forward.1} parent=11 // pred_fallthru
        _
    $region12: #{prb_forward.1} parent=5 // pred_fallthru
      _
    %p170 = scmp.lt.s32.totalorder %s11, 2
    // Predicated region
    $region21: #{prb_forward.1} parent=5 // pred_check
      %p171 = pneg %p170
    $region22: #{prb_forward.1} parent=5 // pred_check_branch
      %173 = sbr.rel (%p171) target = $region24
    $region23: #{prb_forward.1} parent=5 // pred_region
      // Predicated region
      $region25: #{prb_forward.1} parent=23 // pred_check
        %p174 = pneg %p45
      $region26: #{prb_forward.1} parent=23 // pred_check_branch
        %176 = sbr.rel (%p174) target = $region28
      $region27: #{prb_forward.1} parent=23 // pred_region
        %s177 = smul.u32 2, %s19
        %p178 = scmp.lt.s32.totalorder %s18, 1
        %s179 = scalar_select %p178, %s18, 1
        %p180 = scmp.lt.s32.totalorder %s177, 1
        %s181 = scalar_select %p180, %s177, 1
        %s182 = smul.addr %s179, 2
        %s183 = sadd.s32 %s181, %s182
        %s184 = smul.addr %s183, 4
        %s185 = scalar_lea.vmem %s0, %s184
        %s186 = smul.u32 2, %s19
      $region28: #{prb_forward.1} parent=23 // pred_fallthru
        _
      // Predicated region
      $region29: #{prb_forward.1} parent=23 // pred_check
        %p187 = pneg %p73
      $region30: #{prb_forward.1} parent=23 // pred_check_branch
        %189 = sbr.rel (%p187) target = $region32
      $region31: #{prb_forward.1} parent=23 // pred_region
        %s190 = smul.u32 2, %s19
        %p191 = scmp.lt.s32.totalorder %s18, 1
        %s192 = scalar_select %p191, %s18, 1
        %p193 = scmp.lt.s32.totalorder %s190, 1
        %s194 = scalar_select %p193, %s190, 1
        %s195 = smul.addr %s192, 2
        %s196 = sadd.s32 %s194, %s195
        %s197 = scalar_lea.vmem %s1, %s196
        %s198 = smul.u32 2, %s19
      $region32: #{prb_forward.1} parent=23 // pred_fallthru
        _
    $region24: #{prb_forward.1} parent=5 // pred_fallthru
      _
    %p199 = scmp.le.s32.totalorder 1, %s11
    %p200 = scmp.lt.s32.totalorder %s11, 3
    %p201 = pnand %p199, %p200
    %p202 = pneg %p201
    // Predicated region
    $region33: #{prb_forward.1} parent=5 // pred_check
      _
    $region34: #{prb_forward.1} parent=5 // pred_check_branch
      %204 = sbr.rel (%p201) target = $region36
    $region35: #{prb_forward.1} parent=5 // pred_region
      %s205 = ssub.s32 %s11, 1
      %s206 = smul.u32 2, %s21
      %p207 = scmp.lt.s32.totalorder %s20, 1
      %s208 = scalar_select %p207, %s20, 1
      %p209 = scmp.lt.s32.totalorder %s206, 1
      %s210 = scalar_select %p209, %s206, 1
      %s211 = smul.addr %s208, 2
      %s212 = sadd.s32 %s210, %s211
      %s213 = smul.addr %s212, 4
      %s214 = scalar_lea.vmem %s0, %s213
      %p215 = pneg %p51
      %p216 = pneg %p48
      %s217 = smul.u32 2, %s21
      %p218 = scmp.lt.s32.totalorder %s20, 1
      %s219 = scalar_select %p218, %s20, 1
      %p220 = scmp.lt.s32.totalorder %s217, 1
      %s221 = scalar_select %p220, %s217, 1
      %s222 = smul.addr %s219, 2
      %s223 = sadd.s32 %s221, %s222
      %s224 = scalar_lea.vmem %s1, %s223
      %p225 = pneg %p79
      %p226 = pneg %p76
      %p227 = pneg %p100
      %p228 = pneg %p97
      %p229 = pneg %p121
      %p230 = pneg %p118
      %p231 = pneg %p149
      %p232 = pneg %p146
      %s233 = smul.u32 2, %s21
      %p234 = scmp.lt.s32.totalorder %s20, 1
      %s235 = scalar_select %p234, %s20, 1
      %p236 = scmp.lt.s32.totalorder %s233, 1
      %s237 = scalar_select %p236, %s233, 1
      %s238 = smul.addr %s235, 2
      %s239 = sadd.s32 %s237, %s238
      %s240 = scalar_lea.vmem %s4, %s239
      %s241 = smul.u32 2, %s21
      %p242 = scmp.lt.s32.totalorder %s20, 1
      %s243 = scalar_select %p242, %s20, 1
      %p244 = scmp.lt.s32.totalorder %s241, 1
      %s245 = scalar_select %p244, %s241, 1
      %s246 = smul.addr %s243, 2
      %s247 = sadd.s32 %s245, %s246
      %s248 = smul.addr %s247, 4
      %s249 = scalar_lea.vmem %s0, %s248
      %s250 = smul.u32 2, %s21
      %s251 = smul.u32 2, %s21
      %p252 = scmp.lt.s32.totalorder %s20, 1
      %s253 = scalar_select %p252, %s20, 1
      %p254 = scmp.lt.s32.totalorder %s251, 1
      %s255 = scalar_select %p254, %s251, 1
      %s256 = smul.addr %s253, 2
      %s257 = sadd.s32 %s255, %s256
      %s258 = scalar_lea.vmem %s1, %s257
      %s259 = smul.u32 2, %s21
      %s260 = smul.u32 2, %s21
      %p261 = scmp.lt.s32.totalorder %s20, 1
      %s262 = scalar_select %p261, %s20, 1
      %p263 = scmp.lt.s32.totalorder %s260, 1
      %s264 = scalar_select %p263, %s260, 1
      %s265 = smul.addr %s262, 2
      %s266 = sadd.s32 %s264, %s265
      %s267 = scalar_lea.vmem %s4, %s266
      %s268 = smul.u32 2, %s21
      %v269 = vld [vmem:[%s2] sm:$0x1]
      %v270 = vld [vmem:[%s249] sm:$0xff]
      %v271 = vld [vmem:[%s258] sm:$0x3]
      %v273 = vcombine.high %v270, %v270
      %v275 = vlaneseq
      %v276 = vshrl.u32 %v275, 7
      %v277 = vsub.s32 0, %v276
      %v278 = vrot.slane %v271, %v277
      %v279 = vlaneseq
      %v280 = vshrl.u32 %v279, 7
      %v281 = vsub.s32 1, %v280
      %v282 = vrot.slane %v271, %v281
      %vm285 = vcmask 31744
      %v287 = vsel %vm285, %v269, 0
      %vm289 = vcmask 1043456
      %v290 = vsel %vm289, %v270, 0
      %v292 = vsel %vm289, %v273, 0
      %294 = vmatprep.subr.mxu0 0.0
      %295 = vmatpush1.msra.mxu0 0.0
      %296 = vmatprep.subr.mxu0 0.0
      %297 = vmatpush1.msra.mxu0 0.0
      %298 = vmatprep.subr.mxu0 0.0
      %299 = vmatpush1.msra.mxu0 0.0
      %300 = vmatprep.subr.mxu0 0.0
      %301 = vmatpush1.msra.mxu0 0.0
      %302 = vmatprep.subr.mxu0 0.0
      %303 = vmatpush1.msra.mxu0 0.0
      %304 = vmatprep.subr.mxu0 0.0
      %305 = vmatpush1.msra.mxu0 0.0
      %306 = vmatprep.subr.mxu0 0.0
      %307 = vmatpush1.msra.mxu0 0.0
      %308 = vmatprep.subr.mxu0 0.0
      %309 = vmatpush1.msra.mxu0 0.0
      %310 = vmatprep.subr.mxu0 0.0
      %311 = vmatpush1.msra.mxu0 0.0
      %312 = vmatprep.subr.mxu0 0.0
      %313 = vmatpush1.msra.mxu0 0.0
      %314 = vmatprep.subr.mxu0 0.0
      %315 = vmatpush1.msra.mxu0 0.0
      %316 = vmatprep.subr.mxu0 0.0
      %317 = vmatpush1.msra.mxu0 0.0
      %318 = vmatprep.subr.mxu0 0.0
      %319 = vmatpush1.msra.mxu0 0.0
      %320 = vmatprep.subr.mxu0 0.0
      %321 = vmatpush1.msra.mxu0 0.0
      %322 = vmatprep.subr.mxu0 0.0
      %323 = vmatpush1.msra.mxu0 0.0
      %324 = vmatprep.subr.mxu0 %v292
      %325 = vmatpush1.msra.mxu0 %v290
      %326 = vmatprep.subr.mxu0 0.0
      %327 = vmatpush2.msra.mxu0 0.0
      %328 = vmatprep.subr.mxu0 0.0
      %329 = vmatpush2.msra.mxu0 0.0
      %330 = vmatprep.subr.mxu0 0.0
      %331 = vmatpush2.msra.mxu0 0.0
      %332 = vmatprep.subr.mxu0 0.0
      %333 = vmatpush2.msra.mxu0 0.0
      %334 = vmatprep.subr.mxu0 0.0
      %335 = vmatpush2.msra.mxu0 0.0
      %336 = vmatprep.subr.mxu0 0.0
      %337 = vmatpush2.msra.mxu0 0.0
      %338 = vmatprep.subr.mxu0 0.0
      %339 = vmatpush2.msra.mxu0 0.0
      %340 = vmatprep.subr.mxu0 0.0
      %341 = vmatpush2.msra.mxu0 0.0
      %342 = vmatprep.subr.mxu0 0.0
      %343 = vmatpush2.msra.mxu0 0.0
      %344 = vmatprep.subr.mxu0 0.0
      %345 = vmatpush2.msra.mxu0 0.0
      %346 = vmatprep.subr.mxu0 0.0
      %347 = vmatpush2.msra.mxu0 0.0
      %348 = vmatprep.subr.mxu0 0.0
      %349 = vmatpush2.msra.mxu0 0.0
      %350 = vmatprep.subr.mxu0 0.0
      %351 = vmatpush2.msra.mxu0 0.0
      %352 = vmatprep.subr.mxu0 0.0
      %353 = vmatpush2.msra.mxu0 0.0
      %354 = vmatprep.subr.mxu0 0.0
      %355 = vmatpush2.msra.mxu0 0.0
      %356 = vmatprep.subr.mxu0 0.0
      %357 = vmatpush2.msra.mxu0 0.0
      %358 = vmatprep.mubr.f32.mxu0 0.0
      %359 = vmatmul.mubr.f32.gmra.mxu0 %v287
      %v360 = vpop.f32.mrf.mxu0
      %v361 = vadd.f32 %v278, %v360
      %v362 = vpop.f32.mrf.mxu0
      %v363 = vadd.f32 %v282, %v362
      %364 = vdwg.mxu0
      %s365 = sld [smem:[#allocation2]]
      %v366 = vstv %s365
      %v367 = vadd.f32 %v361, %v366
      %v368 = vadd.f32 %v363, %v366
      %v369 = vxor.u32 %v367, 2147483648
      %v370 = vxor.u32 %v368, 2147483648
      %v371 = vmul.f32 %v369, 1.442695
      %v372 = vpow.pop %v371
      %v373 = vmul.f32 %v370, 1.442695
      %v374 = vpow.pop %v373
      %v375 = vadd.f32 %v372, 1.0
      %v376 = vadd.f32 %v374, 1.0
      %v377 = vrcp.pop %v375
      %v378 = vmul.f32 1.0, %v377
      %v379 = vrcp.pop %v376
      %v380 = vmul.f32 1.0, %v379
      %v383 = vcombine.low %v378, %v380
      %v385 = vunpack.c.l.s4 1966171168
      %v386 = vunpack.c.0.s8 %v385
      %v387 = vlaneseq
      %v388 = vshrl.u32 %v387, 7
      %v389 = vsub.s32 %v386, %v388
      %v390 = vrot.slane %v383, %v389
      %v392 = vunpack.c.l.s4 1966171168
      %v393 = vunpack.c.0.s8 %v392
      %v394 = vlaneseq
      %v395 = vshrl.u32 %v394, 7
      %v396 = vsub.s32 %v393, %v395
      %v397 = vrot.slane %v390, %v396
      %v399 = vlaneseq
      %vm400 = vcmp.ge.s32.totalorder %v399, 0
      %vm401 = vcmp.lt.s32.totalorder %v399, 256
      %vm402 = vmand %vm400, %vm401
      %403 = vst.msk [vmem:[%s267] sm:$0x3] %vm402, %v397
      %s404 = smul.u32 2, %s21
      %p405 = scmp.lt.s32.totalorder %s20, 1
      %s406 = scalar_select %p405, %s20, 1
      %p407 = scmp.lt.s32.totalorder %s404, 1
      %s408 = scalar_select %p407, %s404, 1
      %s409 = smul.addr %s406, 2
      %s410 = sadd.s32 %s408, %s409
      %s411 = scalar_lea.vmem %s4, %s410
      // Predicated region
      $region37: #{prb_forward.1} parent=35 // pred_check
        %p412 = pneg %p146
      $region38: #{prb_forward.1} parent=35 // pred_check_branch
        %414 = sbr.rel (%p412) target = $region40
      $region39: #{prb_forward.1} parent=35 // pred_region
        %s415 = smul.u32 2, %s21
      $region40: #{prb_forward.1} parent=35 // pred_fallthru
        _
    $region36: #{prb_forward.1} parent=5 // pred_fallthru
      _
    %p416 = scmp.le.s32.totalorder 2, %s11
    // Predicated region
    $region41: #{prb_forward.1} parent=5 // pred_check
      %p417 = pneg %p416
    $region42: #{prb_forward.1} parent=5 // pred_check_branch
      %419 = sbr.rel (%p417) target = $region44
    $region43: #{prb_forward.1} parent=5 // pred_region
      %s420 = ssub.s32 %s11, 2
      // Predicated region
      $region45: #{prb_forward.1} parent=43 // pred_check
        %p421 = pneg %p152
      $region46: #{prb_forward.1} parent=43 // pred_check_branch
        %423 = sbr.rel (%p421) target = $region48
      $region47: #{prb_forward.1} parent=43 // pred_region
        %s424 = smul.u32 2, %s23
        %p425 = scmp.lt.s32.totalorder %s22, 1
        %s426 = scalar_select %p425, %s22, 1
        %p427 = scmp.lt.s32.totalorder %s424, 1
        %s428 = scalar_select %p427, %s424, 1
        %s429 = smul.addr %s426, 2
        %s430 = sadd.s32 %s428, %s429
        %s431 = scalar_lea.vmem %s4, %s430
      $region48: #{prb_forward.1} parent=43 // pred_fallthru
        _
    $region44: #{prb_forward.1} parent=5 // pred_fallthru
      _
  $region6: #{prb_forward.1} parent=0 // loop_footer
    %s15 = sadd.s32 1, %s11
  $region7: #{prb_forward.1} parent=0 // loop_footer_branch
    %10 = sbr.rel target = $region3
  $region8: #{prb_forward.1} parent=0 // loop_exit
    _

</llo_original>
